<compile_context>
chip_gen: v6e
topology: v6e:2x2x1
jax: 0.10.0
libtpu: 0.0.40
codegen_flags: <defaults>
</compile_context>

<pallas_src>
import jax
import jax.numpy as jnp
import numpy as np
from jax.experimental import pallas as pl
from jax.experimental.pallas import tpu as pltpu  # noqa: F401  (TPU backend)


def _identity_double_kernel(x1_ref, x2_ref, o1_ref, o2_ref):
    # Outputs alias the inputs (input_output_aliases in the wrapper), so the
    # identity is realized with zero DMA traffic: intentionally a no-op.
    del x1_ref, x2_ref, o1_ref, o2_ref


def _identity_double_pallas(input_1, input_2):
    """pallas_call identity: operands left in place, outputs alias inputs."""
    out_shapes = (
        jax.ShapeDtypeStruct(input_1.shape, input_1.dtype),
        jax.ShapeDtypeStruct(input_2.shape, input_2.dtype),
    )
    return pl.pallas_call(
        _identity_double_kernel,
        out_shape=out_shapes,
        in_specs=[
            pl.BlockSpec(memory_space=pl.ANY),  # stay in HBM, no auto-DMA
            pl.BlockSpec(memory_space=pl.ANY),
        ],
        out_specs=(
            pl.BlockSpec(memory_space=pl.ANY),
            pl.BlockSpec(memory_space=pl.ANY),
        ),
        # Each output reuses its input's buffer -> zero HBM round trip
        # (honored when the operands are donated / jit-internal).
        input_output_aliases={0: 0, 1: 1},
    )(input_1, input_2)


def identity_double(input_1, input_2, *, use_pallas=True):
    """Identity_double.forward.

    use_pallas=False returns the operands at the JAX level (zero cost under
    jit); use_pallas=True routes through the zero-copy Pallas custom call
    (only needed when a kernel boundary is mandated).
    """
    if not use_pallas:
        return input_1, input_2
    return _identity_double_pallas(input_1, input_2)


# Preferred entry point: jit + donation so input_output_aliases is honored
# and XLA inserts no defensive HBM copies for entry parameters.
identity_double_jit = jax.jit(_identity_double_pallas, donate_argnums=(0, 1))


if __name__ == "__main__":
    key = jax.random.PRNGKey(0)
    k1, k2 = jax.random.split(key)

    # Small shapes consistent with "any number of dimensions".
    x1 = jax.random.normal(k1, (2, 4, 16, 16), dtype=jnp.float32)  # NCHW-like
    x2 = jax.random.normal(k2, (8, 32), dtype=jnp.float32)         # seq x hidden

    # Snapshot to host BEFORE the call: the jitted call donates the input
    # buffers (outputs alias them), so compare against pre-call host copies.
    x1_host = np.asarray(x1)
    x2_host = np.asarray(x2)

    # Pallas path under jit with donation -> zero-copy identity.
    y1, y2 = identity_double_jit(x1, x2)
    jax.block_until_ready((y1, y2))

    assert y1.shape == tuple(x1_host.shape) and y1.dtype == x1_host.dtype
    assert y2.shape == tuple(x2_host.shape) and y2.dtype == x2_host.dtype
    assert np.array_equal(np.asarray(y1), x1_host)
    assert np.array_equal(np.asarray(y2), x2_host)

    # Kernel-free fast path (pure JAX identity) — same semantics.
    z1, z2 = identity_double(jnp.asarray(x1_host), jnp.asarray(x2_host),
                             use_pallas=False)
    jax.block_until_ready((z1, z2))
    assert np.array_equal(np.asarray(z1), x1_host)
    assert np.array_equal(np.asarray(z2), x2_host)

    print("KERNEL_OK")
</pallas_src>

<mosaic_0001>
module attributes {stable_mosaic.version = 11 : i64} {
  func.func @_identity_double_kernel(%arg0: memref<2x4x16x16xf32, #tpu.memory_space<any>>, %arg1: memref<8x32xf32, #tpu.memory_space<any>>, %arg2: memref<2x4x16x16xf32, #tpu.memory_space<any>>, %arg3: memref<8x32xf32, #tpu.memory_space<any>>) attributes {dimension_semantics = [], scalar_prefetch = 0 : i64, scratch_operands = 0 : i64, tpu.core_type = #tpu.core_type<tc>} {
    return
  }
}

</mosaic_0001>

<llo_original>
// kernel: _identity_double_pallas.1
$region0: #{_identity_double_pallas.1}
  #allocation0 [shape = 'u32[]', space=smem, size = 0x4, offset = 0x4, fixed_abs, tag = 'smem constant byte address 0x4 - core index']
  #allocation1 [shape = 'u32[144,128]{1,0:T(1,128)}', space=vmem, size = 0x12000, scoped, tag = 'internal scratch']
  %s0 = inlined_call_operand.hbm [shape: f32[2,4,16,16], index: 0, kind: input, shape index: {}, may-alias: {0,2}]
  %s1 = inlined_call_operand.hbm [shape: f32[8,32], index: 1, kind: input, shape index: {}, may-alias: {1,3}]
  %s2 = inlined_call_operand.hbm [shape: f32[2,4,16,16], index: 2, kind: output, shape index: {0}, may-alias: {0,2}]
  %s3 = inlined_call_operand.hbm [shape: f32[8,32], index: 3, kind: output, shape index: {1}, may-alias: {1,3}]
  %4 = xla_tuple %s2, %s3
  %s5 = sld [smem:[#allocation0]]
  $region2: #{_identity_double_pallas.1} parent=0
    _
  %s7 = ssub.s32 1, %s5
  %s8 = scalar_select 0, %s7, %s5

</llo_original>
